<compile_context>
chip_gen: v6e
topology: v6e:2x2x1
jax: 0.10.0
libtpu: 0.0.40
codegen_flags: <defaults>
</compile_context>

<pallas_src>
import functools

import jax
import jax.numpy as jnp
from jax import lax
from jax.experimental import pallas as pl
from jax.experimental.pallas import tpu as pltpu

LANES = 128  # one full vreg of lanes


@functools.lru_cache(maxsize=None)
def _roll_matches_jnp():
    """pltpu.roll is documented to follow jnp.roll semantics; probe once on
    the device so the conv lane-shift direction is robust either way."""
    def k(x_ref, o_ref):
        o_ref[...] = pltpu.roll(x_ref[...], shift=1, axis=1)

    x = jnp.arange(LANES, dtype=jnp.float32).reshape(1, LANES)
    y = pl.pallas_call(k, out_shape=jax.ShapeDtypeStruct((1, LANES), jnp.float32))(x)
    return bool(y[0, 0] == LANES - 1)


def _make_kernel(C, f, oh1, ph1, oh2, ph2, roll_is_jnp):
    def lshift(v, k):
        # out[..., j] = v[..., (j + k) % LANES]; the wrapped lanes land in the
        # pad region (columns >= 126) and are never consumed downstream.
        if k == 0:
            return v
        shift = (-k) % LANES if roll_is_jnp else k
        return pltpu.roll(v, shift=shift, axis=1)

    def halves(n):
        h = (n + 1) // 2
        return ((0, h), (h, n - h))

    def conv_relu(src_ref, dst_ref, w_ref, b_ref, oh):
        # f x f 'VALID' conv, stride 1, C->C channels, fused ReLU.
        # Row slabs are re-addressed ref loads (cheap); lane taps are XLU
        # rolls; each tap is reused for all output channels (hoisted over co).
        for r0, nr in halves(oh):
            accs = [jnp.full((nr, LANES), b_ref[co], jnp.float32)
                    for co in range(C)]
            for ci in range(C):
                for kh in range(f):
                    slab = src_ref[ci, r0 + kh:r0 + kh + nr, :]
                    for kw in range(f):
                        tap = lshift(slab, kw)
                        for co in range(C):
                            w = w_ref[((co * C + ci) * f + kh) * f + kw]
                            accs[co] = accs[co] + w * tap
            for co in range(C):
                dst_ref[co, r0:r0 + nr, :] = jnp.maximum(accs[co], 0.0)

    def maxpool(src_ref, co, ph):
        # f x f / stride-1 max pool of src_ref[co, :ph+f-1, :].
        out = None
        for kh in range(f):
            row = src_ref[co, kh:kh + ph, :]
            for kw in range(f):
                tap = lshift(row, kw)
                out = tap if out is None else jnp.maximum(out, tap)
        return out

    def kernel(x_ref, w1_ref, b1_ref, w2_ref, b2_ref, wfc_ref, bfc_ref,
               o_ref, h_scr, p1_scr):
        # conv1 + ReLU
        conv_relu(x_ref, h_scr, w1_ref, b1_ref, oh1)
        # maxpool1 -> VMEM scratch (so conv2 can row-slice a ref)
        for co in range(C):
            p1_scr[co, :, :] = maxpool(h_scr, co, ph1)
        # conv2 + ReLU (reuse h_scr; only rows [0, oh2) are rewritten/read)
        conv_relu(p1_scr, h_scr, w2_ref, b2_ref, oh2)
        # maxpool2 fused with fc1.  torch.flatten(NCHW, 1) is C-major, so the
        # fc weight reshaped to (C, ph2, pw2) (lane-padded with zeros) lines up
        # channel-plane by channel-plane; garbage pad columns are multiplied
        # by zero.
        fc = jnp.zeros((ph2, LANES), jnp.float32)
        for co in range(C):
            fc = fc + maxpool(h_scr, co, ph2) * wfc_ref[co, :, :]
        total = jnp.sum(fc) + bfc_ref[0]
        o_ref[...] = jnp.reshape(total, (1, 1))

    return kernel


def images_vs_notes_forward(x, w1, b1, w2, b2, wfc, bfc, *, filter_size, stride):
    assert stride == 1, "kernel is specialized for the stride-1 configuration"
    B, C, H, W = x.shape
    f = filter_size

    def osz(n):
        return n - f + 1

    oh1, ow1 = osz(H), osz(W)          # after conv1
    ph1, pw1 = osz(oh1), osz(ow1)      # after maxp1
    oh2, ow2 = osz(ph1), osz(pw1)      # after conv2
    ph2, pw2 = osz(oh2), osz(ow2)      # after maxp2
    feat = C * ph2 * pw2
    assert wfc.shape == (1, feat), (wfc.shape, feat)
    assert W <= LANES, "width must fit in one 128-lane vreg"

    # Pad the lane (W) axis to a full 128-lane vreg.  Pad columns only ever
    # produce finite garbage that is either never read or multiplied by the
    # zero-padded fc weight.
    xp = jnp.pad(x, ((0, 0), (0, 0), (0, 0), (0, LANES - W)))
    wfc_p = jnp.pad(wfc.reshape(C, ph2, pw2),            # torch.flatten(NCHW) order
                    ((0, 0), (0, 0), (0, LANES - pw2)))

    kernel = _make_kernel(C, f, oh1, ph1, oh2, ph2, _roll_matches_jnp())

    smem = functools.partial(pl.BlockSpec, memory_space=pltpu.MemorySpace.SMEM)
    out = pl.pallas_call(
        kernel,
        out_shape=jax.ShapeDtypeStruct((B, 1, 1), jnp.float32),
        grid=(B,),
        in_specs=[
            pl.BlockSpec((None, C, H, LANES), lambda b: (b, 0, 0, 0)),  # x (per image)
            smem(),                                                     # conv1 w (flat)
            smem(),                                                     # conv1 b
            smem(),                                                     # conv2 w (flat)
            smem(),                                                     # conv2 b
            pl.BlockSpec((C, ph2, LANES), lambda b: (0, 0, 0)),         # fc1 w (padded)
            smem(),                                                     # fc1 b
        ],
        out_specs=pl.BlockSpec((None, 1, 1), lambda b: (b, 0, 0)),      # per-step scalar
        scratch_shapes=[
            pltpu.VMEM((C, oh1, LANES), jnp.float32),   # h_scr (conv outputs)
            pltpu.VMEM((C, ph1, LANES), jnp.float32),   # p1_scr (pool1 output)
        ],
        compiler_params=pltpu.CompilerParams(
            dimension_semantics=("parallel",)),
    )(xp, w1.reshape(-1), b1, w2.reshape(-1), b2, wfc_p, bfc)
    return out.reshape(B, 1)


def reference_forward(x, w1, b1, w2, b2, wfc, bfc, *, filter_size, stride):
    f, s = filter_size, stride

    def conv(h, w, b):
        y = lax.conv_general_dilated(
            h, w, window_strides=(s, s), padding="VALID",
            dimension_numbers=("NCHW", "OIHW", "NCHW"),
            precision=lax.Precision.HIGHEST)
        return y + b.reshape(1, -1, 1, 1)

    def pool(h):
        return lax.reduce_window(h, -jnp.inf, lax.max,
                                 (1, 1, f, f), (1, 1, s, s), "VALID")

    h = pool(jnp.maximum(conv(x, w1, b1), 0.0))
    h = pool(jnp.maximum(conv(h, w2, b2), 0.0))
    flat = h.reshape(h.shape[0], -1)
    return jnp.dot(flat, wfc.T, precision=lax.Precision.HIGHEST) + bfc


if __name__ == "__main__":
    f, s = 3, 1
    B, C, H, W = 2, 3, 92, 92   # 92 -> conv 90 -> pool 88 -> conv 86 -> pool 84
    FEAT = 84 * 84 * 3          # == nn.Linear(84*84*3, 1) in_features

    key = jax.random.PRNGKey(0)
    kx, k1, k2, k3, k4, k5, k6 = jax.random.split(key, 7)

    def uniform_init(k, shape, fan_in):
        bound = 1.0 / float(fan_in) ** 0.5
        return jax.random.uniform(k, shape, jnp.float32, -bound, bound)

    x = jax.random.normal(kx, (B, C, H, W), jnp.float32)
    w1 = uniform_init(k1, (C, C, f, f), C * f * f)
    b1 = uniform_init(k2, (C,), C * f * f)
    w2 = uniform_init(k3, (C, C, f, f), C * f * f)
    b2 = uniform_init(k4, (C,), C * f * f)
    wfc = uniform_init(k5, (1, FEAT), FEAT)
    bfc = uniform_init(k6, (1,), FEAT)

    out = images_vs_notes_forward(x, w1, b1, w2, b2, wfc, bfc,
                                  filter_size=f, stride=s)
    out = jax.block_until_ready(out)
    assert out.shape == (B, 1) and out.dtype == jnp.float32

    ref = reference_forward(x, w1, b1, w2, b2, wfc, bfc,
                            filter_size=f, stride=s)
    if not jnp.allclose(out, ref, rtol=5e-3, atol=5e-3):
        raise AssertionError(f"mismatch:\n{out}\nvs\n{ref}")
    print("KERNEL_OK")
</pallas_src>

<mosaic_0001>
module attributes {stable_mosaic.version = 11 : i64} {
  func.func @k(%arg0: memref<1x128xf32, #tpu.memory_space<vmem>>, %arg1: memref<1x128xf32, #tpu.memory_space<vmem>>) attributes {dimension_semantics = [], scalar_prefetch = 0 : i64, scratch_operands = 0 : i64, tpu.core_type = #tpu.core_type<tc>} {
    %c0 = arith.constant 0 : index
    %c0_0 = arith.constant 0 : index
    %0 = vector.load %arg0[%c0, %c0_0] : memref<1x128xf32, #tpu.memory_space<vmem>>, vector<1x128xf32>
    %c1_i32 = arith.constant 1 : i32
    %1 = tpu.dynamic_rotate %0 by %c1_i32 dim 1 : vector<1x128xf32>, i32 -> vector<1x128xf32>
    %c0_1 = arith.constant 0 : index
    %c0_2 = arith.constant 0 : index
    %2 = vector.load %arg1[%c0_1, %c0_2] : memref<1x128xf32, #tpu.memory_space<vmem>>, vector<1x128xf32>
    tpu.vector_store %arg1[%c0_1, %c0_2], %1 {strides = array<i32>} : memref<1x128xf32, #tpu.memory_space<vmem>>, vector<1x128xf32>,
    return
  }
}

</mosaic_0001>

<llo_original>
// kernel: tpu_custom_call.1
$region0: #{tpu_custom_call.1}
  #allocation0 [shape = 'u32[]', space=smem, size = 0x4, offset = 0x4, fixed_abs, tag = 'smem constant byte address 0x4 - core index']
  #allocation1 [shape = 'u32[144,128]{1,0:T(1,128)}', space=vmem, size = 0x12000, scoped, tag = 'internal scratch']
  %s0 = inlined_call_operand.hbm [shape: f32[1,128], index: 0, kind: input, shape index: {}]
  %s1 = inlined_call_operand.hbm [shape: f32[1,128], index: 1, kind: output, shape index: {}]
  %s2 = sld [smem:[#allocation0]]
  $region18: #{tpu_custom_call.1} parent=0
    _
  %s4 = ssub.s32 1, %s2
  %s5 = scalar_select 0, %s4, %s2
  $region1: #{tpu_custom_call.1} parent=0
    #allocation2 [shape = 'u8[512]{0}', space=vmem, size = 0x400, scoped, tag = 'input window, operand 0, single buffered']
    #allocation3 [shape = 's32[1]{0}', space=sflag, size = 0x4, scoped, tag = 'scoped memory for tpu_custom_call.1']
    #allocation4 [shape = 's32[1]{0}', space=sflag, size = 0x4, scoped, tag = 'scoped memory for tpu_custom_call.1']
    #allocation5 [shape = 'u8[512]{0}', space=vmem, size = 0x400, scoped, tag = 'output window, operand 0, single buffered']
    %6 = vsyncpa [#allocation3], 0
    %7 = vsyncpa [#allocation4], 0
    // Predicated region
    $region2: #{tpu_custom_call.1} parent=1 // pred_check
      _
    $region3: #{tpu_custom_call.1} parent=1 // pred_check_branch
      %9 = sbr.rel (0) target = $region5
    $region4: #{tpu_custom_call.1} parent=1 // pred_region
      %s11 = ssub.s32 16, 16
      %12 = vsyncadd [#allocation3], %s11
      %s14 = sshll.u32 [#allocation2], 4
      %s15 = int_to_ptr.vmem [resolvable:$true] %s14
      %17 = dma.hbm_to_vmem [thread:$0]  %s0, 16, %s15, [#allocation3]
    $region5: #{tpu_custom_call.1} parent=1 // pred_fallthru
      _
    // Predicated region
    $region6: #{tpu_custom_call.1} parent=1 // pred_check
      _
    $region7: #{tpu_custom_call.1} parent=1 // pred_check_branch
      %19 = sbr.rel (0) target = $region9
    $region8: #{tpu_custom_call.1} parent=1 // pred_region
      %20 = dma.done [#allocation3], 16
    $region9: #{tpu_custom_call.1} parent=1 // pred_fallthru
      _
    %v21 = vld [vmem:[#allocation2] sm:$0x1]
    %22 = vrot.lane.b32.xlu0 %v21, 1
    %v23 = vpop.permute.xlu0 %22
    %24 = vst [vmem:[#allocation5] sm:$0x1] %v23
    // Predicated region
    $region10: #{tpu_custom_call.1} parent=1 // pred_check
      _
    $region11: #{tpu_custom_call.1} parent=1 // pred_check_branch
      %26 = sbr.rel (0) target = $region13
    $region12: #{tpu_custom_call.1} parent=1 // pred_region
      %s28 = ssub.s32 16, 16
      %29 = vsyncadd [#allocation4], %s28
      %s31 = sshll.u32 [#allocation5], 4
      %s32 = int_to_ptr.vmem [resolvable:$true] %s31
      %34 = dma.vmem_to_hbm [thread:$0]  %s32, 16, %s1, [#allocation4]
    $region13: #{tpu_custom_call.1} parent=1 // pred_fallthru
      _
    // Predicated region
    $region14: #{tpu_custom_call.1} parent=1 // pred_check
      _
    $region15: #{tpu_custom_call.1} parent=1 // pred_check_branch
      %36 = sbr.rel (0) target = $region17
    $region16: #{tpu_custom_call.1} parent=1 // pred_region
      %37 = dma.done [#allocation4], 16
    $region17: #{tpu_custom_call.1} parent=1 // pred_fallthru
      _
    %38 = vsyncpa [#allocation3], 1
    %39 = vsyncpa [#allocation4], 1

</llo_original>
